<compile_context>
chip_gen: v5e
topology: v5e:2x2
jax: 0.10.0
libtpu: 0.0.40
codegen_flags: <defaults>
</compile_context>

<pallas_src>
import functools

import jax
import jax.numpy as jnp
from jax.experimental import pallas as pl
from jax.experimental.pallas import tpu as pltpu


def _round_up(x, m):
    return ((x + m - 1) // m) * m


def _reward_kernel_flat(x_ref, s_ref, r_ref, out_ref, *, seq_len, total):
    """Lane-dense path: inputs are the flat (B*T,) stream viewed as (rows, 128)."""
    i = pl.program_id(0)
    x = x_ref[...]                      # (tb, 128) f32  per-token log-probs
    s = s_ref[...]                      # (tb, 128) i32  sampled token ids (0 = pad)
    r = r_ref[...]                      # (tb, 128) f32  per-token reward
    tb, lanes = x.shape

    # start-of-sequence pattern: flat_idx % T == lane % T because T divides 128.
    lane = jax.lax.broadcasted_iota(jnp.int32, (1, lanes), 1)
    start = (lane % seq_len) == 0                       # (1, 128) constant pattern
    # token id at flat index f-1; the lane-0 wrap is a sequence start -> overwritten.
    prev = pltpu.roll(s, shift=1, axis=1) > 0           # (tb, 128) bool
    # validity of this element (masks Pallas boundary-block padding / tail rows).
    row = jax.lax.broadcasted_iota(jnp.int32, (tb, 1), 0) + i * tb
    valid = (row * lanes + lane) < total                # (tb, 128) bool
    mask = valid & (start | prev)

    # select (not multiply): garbage/NaN in padded regions cannot propagate.
    num = jnp.sum(jnp.where(mask, -x * r, 0.0), axis=0, keepdims=True)  # (1, 128)
    den = jnp.sum(jnp.where(mask, 1.0, 0.0), axis=0, keepdims=True)     # (1, 128)
    out_ref[0, 0:1, :] = num
    out_ref[0, 1:2, :] = den


def _reward_kernel_2d(x_ref, s_ref, r_ref, out_ref, *, batch_rows):
    """Fallback path: (tb, T) row blocks, full T extent so the shift stays in-tile."""
    i = pl.program_id(0)
    x = x_ref[...]                      # (tb, T) f32
    s = s_ref[...]                      # (tb, T) i32
    r = r_ref[...]                      # (tb, T) f32
    tb, t = x.shape

    # Shift token ids right by one column; a positive sentinel in column 0 makes
    # (shifted > 0) reproduce cat([ones(B,1), (seq>0)[:, :-1]], dim=1) exactly.
    shifted = jnp.concatenate([jnp.ones((tb, 1), s.dtype), s[:, : t - 1]], axis=1)
    # Row validity from a (tb, 1) iota broadcast (handles the partial last block).
    row = jax.lax.broadcasted_iota(jnp.int32, (tb, 1), 0) + i * tb
    mask = (row < batch_rows) & (shifted > 0)

    num = jnp.sum(jnp.where(mask, -x * r, 0.0), axis=0, keepdims=True)  # (1, T)
    den = jnp.sum(jnp.where(mask, 1.0, 0.0), axis=0, keepdims=True)     # (1, T)
    out_ref[0, 0:1, :] = num
    out_ref[0, 1:2, :] = den


def reward_criterion(inp, seq, reward, *, block_rows=None,
                     vmem_block_budget_bytes=4 * 1024 * 1024):
    """JAX wrapper. inp/reward: float (B, T); seq: int (B, T). Returns scalar f32."""
    inp = jnp.asarray(inp, jnp.float32)
    seq = jnp.asarray(seq, jnp.int32).reshape(inp.shape)
    reward = jnp.asarray(reward, jnp.float32).reshape(inp.shape)
    B, T = inp.shape
    N = B * T

    # Lane-dense repack is free (row-major reshape) only when no padding is needed.
    lane_dense = (T <= 128) and (128 % T == 0) and (N % 128 == 0)
    if lane_dense:
        L = 128
        rows = N // L
        args = (inp.reshape(rows, L), seq.reshape(rows, L), reward.reshape(rows, L))
        padded_t = L
        kernel = functools.partial(_reward_kernel_flat, seq_len=T, total=N)
    else:
        L = T
        rows = B
        args = (inp, seq, reward)
        padded_t = _round_up(T, 128)     # true VMEM footprint incl. lane padding
        kernel = functools.partial(_reward_kernel_2d, batch_rows=B)

    if block_rows is None:
        # (8,128)-padded accounting: ~4 MiB per input block => 3 inputs x 2 pipeline
        # buffers ~= 24 MiB, inside the explicit 32 MiB scoped VMEM limit below.
        tb = max(8, (vmem_block_budget_bytes // (padded_t * 4)) // 8 * 8)
        # Keep >= ~4 blocks when possible so the "parallel" grid axis can shard
        # across both TensorCores on v7x (costs nothing on single-TC v5e/v6e).
        tb = min(tb, max(8, _round_up(pl.cdiv(rows, 4), 8)))
    else:
        tb = min(int(block_rows), rows)
        if tb < rows:
            tb = max(8, (tb // 8) * 8)   # keep the sublane-divisibility rule
    if tb >= rows:
        tb = rows                        # single full-extent block (any row count)
    nb = pl.cdiv(rows, tb)

    partials = pl.pallas_call(
        kernel,
        out_shape=jax.ShapeDtypeStruct((nb, 2, L), jnp.float32),
        grid=(nb,),
        in_specs=[
            pl.BlockSpec((tb, L), lambda i: (i, 0)),   # input (log-probs)
            pl.BlockSpec((tb, L), lambda i: (i, 0)),   # seq (token ids)
            pl.BlockSpec((tb, L), lambda i: (i, 0)),   # reward
        ],
        out_specs=pl.BlockSpec((1, 2, L), lambda i: (i, 0, 0)),
        compiler_params=pltpu.CompilerParams(
            dimension_semantics=("parallel",),
            vmem_limit_bytes=32 * 1024 * 1024,
        ),
        cost_estimate=pl.CostEstimate(
            flops=4 * N,
            transcendentals=0,
            bytes_accessed=3 * N * 4 + nb * 2 * L * 4),
    )(*args)

    num = jnp.sum(partials[:, 0, :])
    den = jnp.sum(partials[:, 1, :])
    return num / den


def _reference(inp, seq, reward):
    inp = jnp.asarray(inp, jnp.float32)
    seq = jnp.asarray(seq, jnp.int32)
    reward = jnp.asarray(reward, jnp.float32)
    mask = (seq > 0).astype(jnp.float32)
    mask = jnp.concatenate(
        [jnp.ones((seq.shape[0], 1), jnp.float32), mask[:, :-1]], axis=1)
    out = -inp * reward * mask
    return jnp.sum(out) / jnp.sum(mask)


if __name__ == "__main__":
    key = jax.random.PRNGKey(0)
    ks = jax.random.split(key, 9)

    # 1) Canonical small shape (B=2, T=8): single full-extent block, 2-D path.
    B, T = 2, 8
    inp = -jnp.abs(jax.random.normal(ks[0], (B, T), jnp.float32))   # log-prob-like
    seq = jax.random.randint(ks[1], (B, T), 0, 5, jnp.int32)        # zeros = padding
    reward = jax.random.normal(ks[2], (B, T), jnp.float32)
    out = jax.block_until_ready(reward_criterion(inp, seq, reward))
    ref = _reference(inp, seq, reward)
    assert jnp.allclose(out, ref, rtol=1e-5, atol=1e-5), (out, ref)

    # 2) Multi-block 2-D path with a remainder block (T does not divide 128).
    B2, T2 = 20, 12
    inp2 = -jnp.abs(jax.random.normal(ks[3], (B2, T2), jnp.float32))
    seq2 = jax.random.randint(ks[4], (B2, T2), 0, 4, jnp.int32)
    reward2 = jax.random.normal(ks[5], (B2, T2), jnp.float32)
    out2 = jax.block_until_ready(
        reward_criterion(inp2, seq2, reward2, block_rows=8))
    ref2 = _reference(inp2, seq2, reward2)
    assert jnp.allclose(out2, ref2, rtol=1e-5, atol=1e-5), (out2, ref2)

    # 3) Lane-dense flat path (T | 128, B*T % 128 == 0), multi-block grid with a
    #    partial last block (exercises roll-based shift + validity masking).
    B3, T3 = 272, 16
    inp3 = -jnp.abs(jax.random.normal(ks[6], (B3, T3), jnp.float32))
    seq3 = jax.random.randint(ks[7], (B3, T3), 0, 4, jnp.int32)
    reward3 = jax.random.normal(ks[8], (B3, T3), jnp.float32)
    out3 = jax.block_until_ready(reward_criterion(inp3, seq3, reward3))
    ref3 = _reference(inp3, seq3, reward3)
    assert jnp.allclose(out3, ref3, rtol=1e-5, atol=1e-5), (out3, ref3)

    print("KERNEL_OK")
</pallas_src>

<mosaic_0001>
module attributes {stable_mosaic.version = 11 : i64} {
  func.func @_reward_kernel_2d(%arg0: i32, %arg1: memref<2x8xf32, #tpu.memory_space<vmem>>, %arg2: memref<2x8xi32, #tpu.memory_space<vmem>>, %arg3: memref<2x8xf32, #tpu.memory_space<vmem>>, %arg4: memref<1x2x8xf32, #tpu.memory_space<vmem>>) attributes {dimension_semantics = [#tpu.dimension_semantics<parallel>], iteration_bounds = array<i64: 1>, scalar_prefetch = 0 : i64, scratch_operands = 0 : i64, tpu.core_type = #tpu.core_type<tc>, window_params = [{transform_indices = @transform_0, window_bounds = array<i64: 2, 8>}, {transform_indices = @transform_1, window_bounds = array<i64: 2, 8>}, {transform_indices = @transform_2, window_bounds = array<i64: 2, 8>}, {transform_indices = @transform_3, window_bounds = array<i64: 1, 2, 8>}]} {
    %c0 = arith.constant 0 : index
    %c0_0 = arith.constant 0 : index
    %0 = vector.load %arg1[%c0, %c0_0] : memref<2x8xf32, #tpu.memory_space<vmem>>, vector<2x8xf32>
    %c0_1 = arith.constant 0 : index
    %c0_2 = arith.constant 0 : index
    %1 = vector.load %arg2[%c0_1, %c0_2] : memref<2x8xi32, #tpu.memory_space<vmem>>, vector<2x8xi32>
    %c0_3 = arith.constant 0 : index
    %c0_4 = arith.constant 0 : index
    %2 = vector.load %arg3[%c0_3, %c0_4] : memref<2x8xf32, #tpu.memory_space<vmem>>, vector<2x8xf32>
    %c1_i32 = arith.constant 1 : i32
    %3 = vector.broadcast %c1_i32 : i32 to vector<2x1xi32>
    %4 = vector.extract_strided_slice %1 {offsets = [0, 0], sizes = [2, 7], strides = [1, 1]} : vector<2x8xi32> to vector<2x7xi32>
    %5 = tpu.concatenate %3, %4 in 1 : vector<2x1xi32>, vector<2x7xi32> -> vector<2x8xi32>
    %6 = tpu.iota {dimensions = array<i32: 0>} : vector<2x1xi32>
    %c2_i32 = arith.constant 2 : i32
    %7 = arith.muli %arg0, %c2_i32 : i32
    %8 = vector.broadcast %7 : i32 to vector<2x1xi32>
    %9 = arith.addi %6, %8 : vector<2x1xi32>
    %c2_i32_5 = arith.constant 2 : i32
    %10 = vector.broadcast %c2_i32_5 : i32 to vector<2x1xi32>
    %11 = arith.cmpi slt, %9, %10 : vector<2x1xi32>
    %c0_i32 = arith.constant 0 : i32
    %12 = vector.broadcast %c0_i32 : i32 to vector<2x8xi32>
    %13 = arith.cmpi sgt, %5, %12 : vector<2x8xi32>
    %14 = vector.broadcast %11 : vector<2x1xi1> to vector<2x8xi1>
    %15 = arith.andi %14, %13 : vector<2x8xi1>
    %cst = arith.constant 0.000000e+00 : f32
    %16 = vector.broadcast %cst : f32 to vector<2x8xf32>
    %17 = arith.subf %16, %0 : vector<2x8xf32>
    %18 = arith.mulf %17, %2 : vector<2x8xf32>
    %cst_6 = arith.constant 0.000000e+00 : f32
    %19 = vector.broadcast %cst_6 : f32 to vector<2x8xf32>
    %20 = arith.select %15, %18, %19 : vector<2x8xi1>, vector<2x8xf32>
    %cst_7 = arith.constant dense<0.000000e+00> : vector<8xf32>
    %21 = vector.multi_reduction <add>, %20, %cst_7 [0] : vector<2x8xf32> to vector<8xf32>
    %22 = vector.shape_cast %21 : vector<8xf32> to vector<1x8xf32>
    %cst_8 = arith.constant 1.000000e+00 : f32
    %cst_9 = arith.constant 0.000000e+00 : f32
    %23 = vector.broadcast %cst_8 : f32 to vector<2x8xf32>
    %24 = vector.broadcast %cst_9 : f32 to vector<2x8xf32>
    %25 = arith.select %15, %23, %24 : vector<2x8xi1>, vector<2x8xf32>
    %cst_10 = arith.constant dense<0.000000e+00> : vector<8xf32>
    %26 = vector.multi_reduction <add>, %25, %cst_10 [0] : vector<2x8xf32> to vector<8xf32>
    %27 = vector.shape_cast %26 : vector<8xf32> to vector<1x8xf32>
    %c0_11 = arith.constant 0 : index
    %c0_12 = arith.constant 0 : index
    %c0_13 = arith.constant 0 : index
    %28 = vector.load %arg4[%c0_11, %c0_12, %c0_13] : memref<1x2x8xf32, #tpu.memory_space<vmem>>, vector<1x1x8xf32>
    %29 = vector.shape_cast %28 : vector<1x1x8xf32> to vector<1x8xf32>
    %30 = vector.shape_cast %22 : vector<1x8xf32> to vector<1x1x8xf32>
    tpu.vector_store %arg4[%c0_11, %c0_12, %c0_13], %30 {strides = array<i32>} : memref<1x2x8xf32, #tpu.memory_space<vmem>>, vector<1x1x8xf32>,
    %c0_14 = arith.constant 0 : index
    %c1 = arith.constant 1 : index
    %c0_15 = arith.constant 0 : index
    %31 = vector.load %arg4[%c0_14, %c1, %c0_15] : memref<1x2x8xf32, #tpu.memory_space<vmem>>, vector<1x1x8xf32>
    %32 = vector.shape_cast %31 : vector<1x1x8xf32> to vector<1x8xf32>
    %33 = vector.shape_cast %27 : vector<1x8xf32> to vector<1x1x8xf32>
    tpu.vector_store %arg4[%c0_14, %c1, %c0_15], %33 {strides = array<i32>} : memref<1x2x8xf32, #tpu.memory_space<vmem>>, vector<1x1x8xf32>,
    return
  }
  func.func @transform_0(%arg0: i32) -> (i32, i32) {
    %c0_i32 = arith.constant 0 : i32
    %c0_i32_0 = arith.constant 0 : i32
    return %arg0, %c0_i32 : i32, i32
  }
  func.func @transform_1(%arg0: i32) -> (i32, i32) {
    %c0_i32 = arith.constant 0 : i32
    %c0_i32_0 = arith.constant 0 : i32
    return %arg0, %c0_i32 : i32, i32
  }
  func.func @transform_2(%arg0: i32) -> (i32, i32) {
    %c0_i32 = arith.constant 0 : i32
    %c0_i32_0 = arith.constant 0 : i32
    return %arg0, %c0_i32 : i32, i32
  }
  func.func @transform_3(%arg0: i32) -> (i32, i32, i32) {
    %c0_i32 = arith.constant 0 : i32
    %c0_i32_0 = arith.constant 0 : i32
    %c0_i32_1 = arith.constant 0 : i32
    return %arg0, %c0_i32, %c0_i32_0 : i32, i32, i32
  }
}

</mosaic_0001>

<llo_original>
// kernel: tpu_custom_call.1
$region0: #{tpu_custom_call.1}
  #allocation0 [shape = 'u32[]', space=smem, size = 0x4, offset = 0x4, fixed_abs, tag = 'smem constant byte address 0x4 - core index']
  #allocation1 [shape = 'u32[72,128]{1,0:T(1,128)}', space=vmem, size = 0x9000, scoped, tag = 'internal scratch']
  %s0 = inlined_call_operand.hbm [shape: f32[2,8], index: 0, kind: input, shape index: {}]
  %s1 = inlined_call_operand.hbm [shape: s32[2,8], index: 1, kind: input, shape index: {}]
  %s2 = inlined_call_operand.hbm [shape: f32[2,8], index: 2, kind: input, shape index: {}]
  %s3 = inlined_call_operand.hbm [shape: f32[1,2,8], index: 3, kind: output, shape index: {}]
  %s4 = sld [smem:[#allocation0]]
  $region34: #{tpu_custom_call.1} parent=0
    _
  %s6 = ssub.s32 1, %s4
  %s7 = scalar_select 0, %s6, %s4
  $region1: #{tpu_custom_call.1} parent=0
    #allocation2 [shape = 'u8[1024]{0}', space=vmem, size = 0x400, scoped, tag = 'input window, operand 0, single buffered']
    #allocation3 [shape = 's32[1]{0}', space=sflag, size = 0x4, scoped, tag = 'scoped memory for tpu_custom_call.1']
    #allocation4 [shape = 's32[1]{0}', space=sflag, size = 0x4, scoped, tag = 'scoped memory for tpu_custom_call.1']
    #allocation5 [shape = 'u8[1024]{0}', space=vmem, size = 0x400, scoped, tag = 'input window, operand 1, single buffered']
    #allocation6 [shape = 's32[1]{0}', space=sflag, size = 0x4, scoped, tag = 'scoped memory for tpu_custom_call.1']
    #allocation7 [shape = 'u8[1024]{0}', space=vmem, size = 0x400, scoped, tag = 'input window, operand 2, single buffered']
    #allocation8 [shape = 'u8[1024]{0}', space=vmem, size = 0x400, scoped, tag = 'output window, operand 0, single buffered']
    %8 = vsyncpa [#allocation3], 0
    %9 = vsyncpa [#allocation6], 0
    %10 = vsyncpa [#allocation4], 0
    // Predicated region
    $region2: #{tpu_custom_call.1} parent=1 // pred_check
      _
    $region3: #{tpu_custom_call.1} parent=1 // pred_check_branch
      %12 = sbr.rel (0) target = $region5
    $region4: #{tpu_custom_call.1} parent=1 // pred_region
      %14 = vsyncadd [#allocation3], 0
      %s16 = sshll.u32 %s0, 4
      %s17 = int_to_ptr.hbm [resolvable:$true] %s16
      %s18 = sshll.u32 [#allocation2], 4
      %s19 = int_to_ptr.vmem [resolvable:$true] %s18
      %21 = dma.hbm_to_vmem [thread:$0]  %s17, 32, %s19, [#allocation3]
    $region5: #{tpu_custom_call.1} parent=1 // pred_fallthru
      _
    // Predicated region
    $region6: #{tpu_custom_call.1} parent=1 // pred_check
      _
    $region7: #{tpu_custom_call.1} parent=1 // pred_check_branch
      %23 = sbr.rel (0) target = $region9
    $region8: #{tpu_custom_call.1} parent=1 // pred_region
      %25 = vsyncadd [#allocation6], 0
      %s27 = sshll.u32 %s1, 4
      %s28 = int_to_ptr.hbm [resolvable:$true] %s27
      %s29 = sshll.u32 [#allocation5], 4
      %s30 = int_to_ptr.vmem [resolvable:$true] %s29
      %32 = dma.hbm_to_vmem [thread:$0]  %s28, 32, %s30, [#allocation6]
    $region9: #{tpu_custom_call.1} parent=1 // pred_fallthru
      _
    // Predicated region
    $region10: #{tpu_custom_call.1} parent=1 // pred_check
      _
    $region11: #{tpu_custom_call.1} parent=1 // pred_check_branch
      %34 = sbr.rel (0) target = $region13
    $region12: #{tpu_custom_call.1} parent=1 // pred_region
      %36 = vsyncadd [#allocation6], 0
      %s38 = sshll.u32 %s2, 4
      %s39 = int_to_ptr.hbm [resolvable:$true] %s38
      %s40 = sshll.u32 [#allocation7], 4
      %s41 = int_to_ptr.vmem [resolvable:$true] %s40
      %43 = dma.hbm_to_vmem [thread:$0]  %s39, 32, %s41, [#allocation6]
    $region13: #{tpu_custom_call.1} parent=1 // pred_fallthru
      _
    // Predicated region
    $region14: #{tpu_custom_call.1} parent=1 // pred_check
      _
    $region15: #{tpu_custom_call.1} parent=1 // pred_check_branch
      %45 = sbr.rel (0) target = $region17
    $region16: #{tpu_custom_call.1} parent=1 // pred_region
      %47 = dma.done [#allocation3], 32
    $region17: #{tpu_custom_call.1} parent=1 // pred_fallthru
      _
    // Predicated region
    $region18: #{tpu_custom_call.1} parent=1 // pred_check
      _
    $region19: #{tpu_custom_call.1} parent=1 // pred_check_branch
      %49 = sbr.rel (0) target = $region21
    $region20: #{tpu_custom_call.1} parent=1 // pred_region
      %51 = dma.done [#allocation6], 32
    $region21: #{tpu_custom_call.1} parent=1 // pred_fallthru
      _
    // Predicated region
    $region22: #{tpu_custom_call.1} parent=1 // pred_check
      _
    $region23: #{tpu_custom_call.1} parent=1 // pred_check_branch
      %53 = sbr.rel (0) target = $region25
    $region24: #{tpu_custom_call.1} parent=1 // pred_region
      %55 = dma.done [#allocation6], 32
    $region25: #{tpu_custom_call.1} parent=1 // pred_fallthru
      _
    %v56 = vld [vmem:[#allocation2] sm:$0x3]
    %v57 = vld [vmem:[#allocation5] sm:$0x3]
    %v58 = vld [vmem:[#allocation7] sm:$0x3]
    %59 = vrot.lane.b32.xlu0 %v57, 1
    %v60 = vpop.permute.xlu0 %59
    %vm61 = vcmask 7168
    %v62 = vsel %vm61, 1, %v60
    %v63 = vlaneseq
    %v64 = vshrl.u32 %v63, 7
    %s65 = smul.u32 0, 2
    %v66 = vstv %s65
    %v67 = vadd.s32 %v64, %v66
    %vm68 = vcmp.lt.s32.totalorder %v67, 2
    %vm69 = vcmp.gt.s32.totalorder %v62, 0
    %v70 = vsel %vm68, 1, 0
    %vm71 = vcmp.eq.s32.totalorder %v70, 1
    %vm72 = vmand %vm71, %vm69
    %v73 = vsub.f32 0.0, %v56
    %v74 = vmul.f32 %v73, %v58
    %v75 = vsel %vm72, %v74, 0.0
    %vm76 = vcmask 58368
    %v77 = vsel %vm76, %v75, 0.0
    %v78 = vrot.slane %v77, 4
    %v79 = vadd.f32 %v77, %v78
    %v80 = vrot.slane %v79, 2
    %v81 = vadd.f32 %v79, %v80
    %v82 = vrot.slane %v81, 1
    %v83 = vadd.f32 %v81, %v82
    %v84 = vsel %vm72, 1.0, 0.0
    %v85 = vsel %vm76, %v84, 0.0
    %v86 = vrot.slane %v85, 4
    %v87 = vadd.f32 %v85, %v86
    %v88 = vrot.slane %v87, 2
    %v89 = vadd.f32 %v87, %v88
    %v90 = vrot.slane %v89, 1
    %v91 = vadd.f32 %v89, %v90
    %vm92 = vcmask 57344
    %93 = vst.msk [vmem:[#allocation8] sm:$0x1] %vm92, %v83
    %94 = vst.msk [vmem:[#allocation8 + $0x1] sm:$0x1] %vm92, %v91
    // Predicated region
    $region26: #{tpu_custom_call.1} parent=1 // pred_check
      _
    $region27: #{tpu_custom_call.1} parent=1 // pred_check_branch
      %96 = sbr.rel (0) target = $region29
    $region28: #{tpu_custom_call.1} parent=1 // pred_region
      %98 = vsyncadd [#allocation4], 0
      %s100 = sshll.u32 [#allocation8], 4
      %s101 = int_to_ptr.vmem [resolvable:$true] %s100
      %s102 = sshll.u32 %s3, 4
      %s103 = int_to_ptr.hbm [resolvable:$true] %s102
      %105 = dma.vmem_to_hbm [thread:$0]  %s101, 32, %s103, [#allocation4]
    $region29: #{tpu_custom_call.1} parent=1 // pred_fallthru
      _
    // Predicated region
    $region30: #{tpu_custom_call.1} parent=1 // pred_check
      _
    $region31: #{tpu_custom_call.1} parent=1 // pred_check_branch
      %107 = sbr.rel (0) target = $region33
    $region32: #{tpu_custom_call.1} parent=1 // pred_region
      %109 = dma.done [#allocation4], 32
    $region33: #{tpu_custom_call.1} parent=1 // pred_fallthru
      _
    %110 = vsyncpa [#allocation3], 1
    %111 = vsyncpa [#allocation6], 1
    %112 = vsyncpa [#allocation4], 1

</llo_original>
